<compile_context>
chip_gen: v7x
topology: tpu7x:2x2x1
jax: 0.10.0
libtpu: 0.0.40
codegen_flags: <defaults>
</compile_context>

<pallas_src>
import jax
import jax.numpy as jnp
from jax import lax
from jax.experimental import pallas as pl
from jax.experimental.pallas import tpu as pltpu


# ------------------------------------------------------------------
# Fused MLP kernel:  out^T = W2 @ relu(W1 · x^T + b1) + b2
# ------------------------------------------------------------------
def _mlp_kernel(x_ref, w1_ref, b1_ref, w2_ref, b2_ref, o_ref):
    # x:  (TB, input_size) bf16     w1: (hidden, input_size) bf16   b1: (hidden, 1) f32
    # w2: (classes, hidden) bf16    b2: (classes, 1) f32            o:  (classes, TB) f32
    #
    # fc1: contract the shared last (input_size) axis of W1 and the x block,
    # keeping the batch dimension on lanes of h (no HBM-side transpose of x).
    h = lax.dot_general(
        w1_ref[...], x_ref[...],
        dimension_numbers=(((1,), (1,)), ((), ())),
        preferred_element_type=jnp.float32)              # (hidden, TB) f32
    h = jnp.maximum(h + b1_ref[...], 0.0)
    # fc2 is tiny (num_classes rows) — MXU/VPU filler under the DMA-bound regime.
    o = jnp.dot(w2_ref[...], h.astype(w2_ref.dtype),
                preferred_element_type=jnp.float32)       # (classes, TB) f32
    o_ref[...] = o + b2_ref[...]


# ------------------------------------------------------------------
# Batch-tile sizing: VMEM-budgeted, multiple of 128, >= 2 grid steps on v7x
# ------------------------------------------------------------------
def _pick_block_b(batch, input_size, num_classes, *,
                  target=1024, vmem_budget_bytes=24 * 1024 * 1024):
    # Bytes per batch row that scale with block_b:
    #   2 x double-buffered bf16 x tile  +  2 x double-buffered f32 out tile
    bytes_per_row = 2 * input_size * 2 + 2 * num_classes * 4
    rows_fit = max(128, vmem_budget_bytes // max(bytes_per_row, 1))
    bb = max(128, min(target, (rows_fit // 128) * 128))
    # v7x has 2 TensorCores: keep >= 2 grid steps when the batch allows it.
    half = -(-batch // 2)                  # cdiv(batch, 2)
    half_up = -(-half // 128) * 128        # round up to a multiple of 128
    return max(128, min(bb, half_up))


# ------------------------------------------------------------------
# Forward pass wrapper
# ------------------------------------------------------------------
def fully_connected_forward(prepared, x, *, block_b=None):
    """Forward pass of FullyConnected. `x` is reshaped to (-1, input_size)
    exactly like torch's x.view(-1, input_size)."""
    w1, b1, w2, b2 = (prepared["w1"], prepared["b1"],
                      prepared["w2"], prepared["b2"])
    hidden, input_size = w1.shape
    num_classes = w2.shape[0]

    # torch .view(-1, input_size); bf16 operands halve x DMA bytes
    # (ideally the caller already provides bf16 activations).
    x2 = x.reshape(-1, input_size).astype(jnp.bfloat16)
    b = x2.shape[0]

    if block_b is None:
        block_b = _pick_block_b(b, input_size, num_classes)
    nb = pl.cdiv(b, block_b)               # no padding: boundary block is masked

    # Explicit VMEM budget: double-buffered x/out tiles + single-buffered weights.
    x_tile_bytes = block_b * input_size * 2
    o_tile_bytes = num_classes * block_b * 4
    w_bytes = (w1.size + w2.size) * 2 + (b1.size + b2.size) * 4
    vmem_limit = int(min(48 * 1024 * 1024,
                         max(16 * 1024 * 1024,
                             2 * (x_tile_bytes + o_tile_bytes) + w_bytes + (4 << 20))))

    cost = pl.CostEstimate(
        flops=2 * b * input_size * hidden + 2 * b * hidden * num_classes,
        transcendentals=0,
        bytes_accessed=int(x2.size) * 2 + int(w_bytes) + b * num_classes * 4)

    # Constant-index weights/biases: resident, single-buffered.
    resident = dict(pipeline_mode=pl.Buffered(1))

    out_t = pl.pallas_call(
        _mlp_kernel,
        out_shape=jax.ShapeDtypeStruct((num_classes, b), jnp.float32),
        grid_spec=pltpu.PrefetchScalarGridSpec(
            num_scalar_prefetch=0,
            grid=(nb,),
            in_specs=[
                pl.BlockSpec((block_b, input_size), lambda i: (i, 0)),
                pl.BlockSpec((hidden, input_size), lambda i: (0, 0), **resident),
                pl.BlockSpec((hidden, 1), lambda i: (0, 0), **resident),
                pl.BlockSpec((num_classes, hidden), lambda i: (0, 0), **resident),
                pl.BlockSpec((num_classes, 1), lambda i: (0, 0), **resident),
            ],
            out_specs=pl.BlockSpec((num_classes, block_b), lambda i: (0, i)),
        ),
        compiler_params=pltpu.CompilerParams(
            dimension_semantics=("parallel",),
            vmem_limit_bytes=vmem_limit,
        ),
        cost_estimate=cost,
    )(x2, w1, b1, w2, b2)

    return out_t.T                          # (B, num_classes), f32


# ------------------------------------------------------------------
# Parameters (PyTorch nn.Linear default-like uniform init) + one-time prep
# ------------------------------------------------------------------
def init_params(key, input_size, hidden_size, num_classes):
    def uni(k, shape, fan_in):
        bound = 1.0 / float(fan_in) ** 0.5
        return jax.random.uniform(k, shape, jnp.float32, -bound, bound)

    k1, k2, k3, k4 = jax.random.split(key, 4)
    return {
        "w1": uni(k1, (hidden_size, input_size), input_size),    # fc1.weight
        "b1": uni(k2, (hidden_size,), input_size),               # fc1.bias
        "w2": uni(k3, (num_classes, hidden_size), hidden_size),  # fc2.weight
        "b2": uni(k4, (num_classes,), hidden_size),              # fc2.bias
    }


def prepare_params(params):
    """One-time layout/dtype prep (hoisted out of the per-forward path):
    bf16 weights for full-rate MXU + halved DMA bytes; f32 column biases
    added after f32 accumulation."""
    return {
        "w1": params["w1"].astype(jnp.bfloat16),
        "b1": params["b1"].reshape(-1, 1).astype(jnp.float32),
        "w2": params["w2"].astype(jnp.bfloat16),
        "b2": params["b2"].reshape(-1, 1).astype(jnp.float32),
    }


# ------------------------------------------------------------------
# Pure-JAX reference (mirrors the PyTorch forward; uses the same bf16 operand
# quantization + f32 accumulation as the kernel so the comparison checks the
# kernel, not the quantization).
# ------------------------------------------------------------------
def reference_forward(params, x, input_size):
    x2 = x.reshape(-1, input_size).astype(jnp.bfloat16)
    w1 = params["w1"].astype(jnp.bfloat16)
    w2 = params["w2"].astype(jnp.bfloat16)
    h = jnp.dot(x2, w1.T, preferred_element_type=jnp.float32) + params["b1"]
    h = jnp.maximum(h, 0.0)
    return (jnp.dot(h.astype(jnp.bfloat16), w2.T,
                    preferred_element_type=jnp.float32) + params["b2"])


if __name__ == "__main__":
    input_size, hidden_size, num_classes = 2, 4, 3

    key = jax.random.PRNGKey(0)
    k_param, k_x = jax.random.split(key)
    params = init_params(k_param, input_size, hidden_size, num_classes)
    prepared = prepare_params(params)

    # batch=300: exercises a multi-step grid (block_b=256 -> 2 steps) AND the
    # unpadded partial boundary block (300 is not a multiple of 256).
    batch = 300
    x = jax.random.normal(k_x, (batch, input_size), jnp.float32)

    fwd = jax.jit(fully_connected_forward)
    out = fwd(prepared, x)
    out = jax.block_until_ready(out)

    assert out.shape == (batch, num_classes), out.shape
    ref = reference_forward(params, x, input_size)
    assert jnp.allclose(out, ref, rtol=1e-2, atol=1e-2), (
        "mismatch vs reference", jnp.max(jnp.abs(out - ref)))

    print("KERNEL_OK")
</pallas_src>

<mosaic_0001>
module attributes {stable_mosaic.version = 11 : i64} {
  func.func @_mlp_kernel(%arg0: i32, %arg1: memref<256x2xbf16, #tpu.memory_space<vmem>>, %arg2: memref<4x2xbf16, #tpu.memory_space<vmem>>, %arg3: memref<4x1xf32, #tpu.memory_space<vmem>>, %arg4: memref<3x4xbf16, #tpu.memory_space<vmem>>, %arg5: memref<3x1xf32, #tpu.memory_space<vmem>>, %arg6: memref<3x256xf32, #tpu.memory_space<vmem>>) attributes {dimension_semantics = [#tpu.dimension_semantics<parallel>], iteration_bounds = array<i64: 2>, scalar_prefetch = 0 : i64, scratch_operands = 0 : i64, tpu.core_type = #tpu.core_type<tc>, window_params = [{transform_indices = @transform_0, window_bounds = array<i64: 256, 2>}, {pipeline_mode = #tpu.pipeline_mode<synchronous>, transform_indices = @transform_1, window_bounds = array<i64: 4, 2>}, {pipeline_mode = #tpu.pipeline_mode<synchronous>, transform_indices = @transform_2, window_bounds = array<i64: 4, 1>}, {pipeline_mode = #tpu.pipeline_mode<synchronous>, transform_indices = @transform_3, window_bounds = array<i64: 3, 4>}, {pipeline_mode = #tpu.pipeline_mode<synchronous>, transform_indices = @transform_4, window_bounds = array<i64: 3, 1>}, {transform_indices = @transform_5, window_bounds = array<i64: 3, 256>}]} {
    %c0 = arith.constant 0 : index
    %c0_0 = arith.constant 0 : index
    %0 = vector.load %arg2[%c0, %c0_0] : memref<4x2xbf16, #tpu.memory_space<vmem>>, vector<4x2xbf16>
    %c0_1 = arith.constant 0 : index
    %c0_2 = arith.constant 0 : index
    %1 = vector.load %arg1[%c0_1, %c0_2] : memref<256x2xbf16, #tpu.memory_space<vmem>>, vector<256x2xbf16>
    %cst = arith.constant dense<0.000000e+00> : vector<4x256xf32>
    %2 = tpu.matmul %0, %1, %cst {dimension_numbers = #tpu.dot_dimension_numbers<[1], [1], [0], [0], [0, 0, 1, 0], [], []>} : vector<4x2xbf16>, vector<256x2xbf16>, vector<4x256xf32> -> vector<4x256xf32>
    %c0_3 = arith.constant 0 : index
    %c0_4 = arith.constant 0 : index
    %3 = vector.load %arg3[%c0_3, %c0_4] : memref<4x1xf32, #tpu.memory_space<vmem>>, vector<4x1xf32>
    %4 = vector.broadcast %3 : vector<4x1xf32> to vector<4x256xf32>
    %5 = arith.addf %2, %4 : vector<4x256xf32>
    %cst_5 = arith.constant 0.000000e+00 : f32
    %6 = vector.broadcast %cst_5 : f32 to vector<4x256xf32>
    %7 = arith.maximumf %5, %6 : vector<4x256xf32>
    %c0_6 = arith.constant 0 : index
    %c0_7 = arith.constant 0 : index
    %8 = vector.load %arg4[%c0_6, %c0_7] : memref<3x4xbf16, #tpu.memory_space<vmem>>, vector<3x4xbf16>
    %9 = arith.truncf %7 : vector<4x256xf32> to vector<4x256xbf16>
    %cst_8 = arith.constant dense<0.000000e+00> : vector<3x256xf32>
    %10 = tpu.matmul %8, %9, %cst_8 {dimension_numbers = #tpu.dot_dimension_numbers<[1], [0], [0], [1], [0, 0, 1, 1], [], []>} : vector<3x4xbf16>, vector<4x256xbf16>, vector<3x256xf32> -> vector<3x256xf32>
    %c0_9 = arith.constant 0 : index
    %c0_10 = arith.constant 0 : index
    %11 = vector.load %arg5[%c0_9, %c0_10] : memref<3x1xf32, #tpu.memory_space<vmem>>, vector<3x1xf32>
    %12 = vector.broadcast %11 : vector<3x1xf32> to vector<3x256xf32>
    %13 = arith.addf %10, %12 : vector<3x256xf32>
    %c0_11 = arith.constant 0 : index
    %c0_12 = arith.constant 0 : index
    %14 = vector.load %arg6[%c0_11, %c0_12] : memref<3x256xf32, #tpu.memory_space<vmem>>, vector<3x256xf32>
    tpu.vector_store %arg6[%c0_11, %c0_12], %13 {strides = array<i32>} : memref<3x256xf32, #tpu.memory_space<vmem>>, vector<3x256xf32>,
    return
  }
  func.func @transform_0(%arg0: i32) -> (i32, i32) {
    %c0_i32 = arith.constant 0 : i32
    %c0_i32_0 = arith.constant 0 : i32
    return %arg0, %c0_i32 : i32, i32
  }
  func.func @transform_1(%arg0: i32) -> (i32, i32) {
    %c0_i32 = arith.constant 0 : i32
    %c0_i32_0 = arith.constant 0 : i32
    %c0_i32_1 = arith.constant 0 : i32
    return %c0_i32, %c0_i32_0 : i32, i32
  }
  func.func @transform_2(%arg0: i32) -> (i32, i32) {
    %c0_i32 = arith.constant 0 : i32
    %c0_i32_0 = arith.constant 0 : i32
    %c0_i32_1 = arith.constant 0 : i32
    return %c0_i32, %c0_i32_0 : i32, i32
  }
  func.func @transform_3(%arg0: i32) -> (i32, i32) {
    %c0_i32 = arith.constant 0 : i32
    %c0_i32_0 = arith.constant 0 : i32
    %c0_i32_1 = arith.constant 0 : i32
    return %c0_i32, %c0_i32_0 : i32, i32
  }
  func.func @transform_4(%arg0: i32) -> (i32, i32) {
    %c0_i32 = arith.constant 0 : i32
    %c0_i32_0 = arith.constant 0 : i32
    %c0_i32_1 = arith.constant 0 : i32
    return %c0_i32, %c0_i32_0 : i32, i32
  }
  func.func @transform_5(%arg0: i32) -> (i32, i32) {
    %c0_i32 = arith.constant 0 : i32
    %c0_i32_0 = arith.constant 0 : i32
    return %c0_i32, %arg0 : i32, i32
  }
}

</mosaic_0001>

<llo_original>
// kernel: fully_connected_forward.1
$region0: #{fully_connected_forward.1}
  #allocation0 [shape = 'u32[]', space=smem, size = 0x4, offset = 0x4, fixed_abs, tag = 'smem constant byte address 0x4 - core index']
  #allocation1 [shape = 'u32[144,128]{1,0:T(1,128)}', space=vmem, size = 0x12000, scoped, tag = 'internal scratch']
  %s0 = inlined_call_operand.vmem [shape: bf16[300,2], index: 0, kind: input, shape index: {}]
  %s1 = inlined_call_operand.vmem [shape: bf16[4,2], index: 1, kind: input, shape index: {}]
  %s2 = inlined_call_operand.vmem [shape: f32[4,1], index: 2, kind: input, shape index: {}]
  %s3 = inlined_call_operand.vmem [shape: bf16[3,4], index: 3, kind: input, shape index: {}]
  %s4 = inlined_call_operand.vmem [shape: f32[3,1], index: 4, kind: input, shape index: {}]
  %s5 = inlined_call_operand.hbm [shape: f32[3,300], index: 5, kind: output, shape index: {}]
  %s6 = sld [smem:[#allocation0]]
  $region53: #{fully_connected_forward.1} parent=0
    _
  %s8 = ssub.s32 1, %s6
  %s9 = scalar_select 0, %s8, %s6
  $region1: #{fully_connected_forward.1} parent=0
    #allocation2 [shape = 'u8[8192]{0}', space=vmem, size = 0x2000, scoped, tag = 'output window, operand 0']
    #allocation3 [shape = 's32[2]{0}', space=sflag, size = 0x8, scoped, tag = 'scoped memory for fully_connected_forward.1']
    %10 = vsyncpa [#allocation3], 0
    %s11 = scalar_lea.sflag [#allocation3], 1
    %12 = vsyncpa %s11, 0
    loop: start=0, step=1, limit=4
    $region2: #{fully_connected_forward.1} parent=1 // loop_pre_header
      _
    $region3: #{fully_connected_forward.1} parent=1 // loop_header
      %s14 = sphi 0, %s18
      %p15 = scmp.ge.s32.totalorder %s14, 4
      %s24 = sphi 0, %s26
      %s27 = sphi 0, %s24
      %s28 = sphi 0, %s27
      %s44 = sphi 0, %s28
      %s48 = sphi 0, %s48
      %s50 = sphi 0, %s48
      %s51 = sphi 0, %s50
      %s65 = sphi 0, %s51
      %s69 = sphi 0, %s69
      %s71 = sphi 0, %s69
      %s72 = sphi 0, %s71
      %s86 = sphi 0, %s72
      %s90 = sphi 0, %s90
      %s92 = sphi 0, %s90
      %s93 = sphi 0, %s92
      %s107 = sphi 0, %s93
      %s111 = sphi 0, %s111
      %s113 = sphi 0, %s111
      %s114 = sphi 0, %s113
      %s128 = sphi 0, %s114
      %s134 = sphi 0, %s136
      %s137 = sphi 0, %s134
      %s138 = sphi 0, %s137
      %s154 = sphi 0, %s138
    $region4: #{fully_connected_forward.1} parent=1 // loop_header_branch
      %17 = sbr.rel (%p15) target = $region8
    $region5: #{fully_connected_forward.1} parent=1 // loop_body
      %s19 = ssub.s32 %s14, 1
      %s20 = ssub.s32 %s14, 2
      %s21 = sadd.s32 %s14, 1
      %s22 = ssub.s32 %s14, %s21
      %p23 = scmp.eq.s32.totalorder %s22, 0
      %s25 = sadd.s32 %s24, 1
      %s26 = scalar_select %p23, %s24, %s25
      %p29 = pneg %p23
      %p30 = scmp.eq.s32.totalorder %s14, 1
      %p31 = por %p29, %p30
      %p32 = scmp.ne.s32.totalorder %s24, %s27
      %p33 = scmp.eq.s32.totalorder %s14, 0
      %p34 = por %p32, %p33
      %p35 = scmp.ne.s32.totalorder %s24, %s27
      %p36 = scmp.eq.s32.totalorder %s19, 1
      %p37 = por %p35, %p36
      %p38 = scmp.ne.s32.totalorder %s27, %s28
      %p39 = scmp.eq.s32.totalorder %s19, 0
      %p40 = por %p38, %p39
      %p41 = scmp.ne.s32.totalorder %s27, %s28
      %p42 = scmp.eq.s32.totalorder %s20, 1
      %p43 = por %p41, %p42
      %p45 = scmp.ne.s32.totalorder %s28, %s44
      %p46 = scmp.eq.s32.totalorder %s20, 0
      %p47 = por %p45, %p46
      %s49 = sadd.s32 %s48, 1
      %p52 = scmp.eq.s32.totalorder %s14, 1
      %p53 = scmp.ne.s32.totalorder %s48, %s50
      %p54 = scmp.eq.s32.totalorder %s14, 0
      %p55 = por %p53, %p54
      %p56 = scmp.ne.s32.totalorder %s48, %s50
      %p57 = scmp.eq.s32.totalorder %s19, 1
      %p58 = por %p56, %p57
      %p59 = scmp.ne.s32.totalorder %s50, %s51
      %p60 = scmp.eq.s32.totalorder %s19, 0
      %p61 = por %p59, %p60
      %p62 = scmp.ne.s32.totalorder %s50, %s51
      %p63 = scmp.eq.s32.totalorder %s20, 1
      %p64 = por %p62, %p63
      %p66 = scmp.ne.s32.totalorder %s51, %s65
      %p67 = scmp.eq.s32.totalorder %s20, 0
      %p68 = por %p66, %p67
      %s70 = sadd.s32 %s69, 1
      %p73 = scmp.eq.s32.totalorder %s14, 1
      %p74 = scmp.ne.s32.totalorder %s69, %s71
      %p75 = scmp.eq.s32.totalorder %s14, 0
      %p76 = por %p74, %p75
      %p77 = scmp.ne.s32.totalorder %s69, %s71
      %p78 = scmp.eq.s32.totalorder %s19, 1
      %p79 = por %p77, %p78
      %p80 = scmp.ne.s32.totalorder %s71, %s72
      %p81 = scmp.eq.s32.totalorder %s19, 0
      %p82 = por %p80, %p81
      %p83 = scmp.ne.s32.totalorder %s71, %s72
      %p84 = scmp.eq.s32.totalorder %s20, 1
      %p85 = por %p83, %p84
      %p87 = scmp.ne.s32.totalorder %s72, %s86
      %p88 = scmp.eq.s32.totalorder %s20, 0
      %p89 = por %p87, %p88
      %s91 = sadd.s32 %s90, 1
      %p94 = scmp.eq.s32.totalorder %s14, 1
      %p95 = scmp.ne.s32.totalorder %s90, %s92
      %p96 = scmp.eq.s32.totalorder %s14, 0
      %p97 = por %p95, %p96
      %p98 = scmp.ne.s32.totalorder %s90, %s92
      %p99 = scmp.eq.s32.totalorder %s19, 1
      %p100 = por %p98, %p99
      %p101 = scmp.ne.s32.totalorder %s92, %s93
      %p102 = scmp.eq.s32.totalorder %s19, 0
      %p103 = por %p101, %p102
      %p104 = scmp.ne.s32.totalorder %s92, %s93
      %p105 = scmp.eq.s32.totalorder %s20, 1
      %p106 = por %p104, %p105
      %p108 = scmp.ne.s32.totalorder %s93, %s107
      %p109 = scmp.eq.s32.totalorder %s20, 0
      %p110 = por %p108, %p109
      %s112 = sadd.s32 %s111, 1
      %p115 = scmp.eq.s32.totalorder %s14, 1
      %p116 = scmp.ne.s32.totalorder %s111, %s113
      %p117 = scmp.eq.s32.totalorder %s14, 0
      %p118 = por %p116, %p117
      %p119 = scmp.ne.s32.totalorder %s111, %s113
      %p120 = scmp.eq.s32.totalorder %s19, 1
      %p121 = por %p119, %p120
      %p122 = scmp.ne.s32.totalorder %s113, %s114
      %p123 = scmp.eq.s32.totalorder %s19, 0
      %p124 = por %p122, %p123
      %p125 = scmp.ne.s32.totalorder %s113, %s114
      %p126 = scmp.eq.s32.totalorder %s20, 1
      %p127 = por %p125, %p126
      %p129 = scmp.ne.s32.totalorder %s114, %s128
      %p130 = scmp.eq.s32.totalorder %s20, 0
      %p131 = por %p129, %p130
      %s132 = ssub.s32 %s14, %s21
      %p133 = scmp.eq.s32.totalorder %s132, 0
      %s135 = sadd.s32 %s134, 1
      %s136 = scalar_select %p133, %s134, %s135
      %p139 = pneg %p133
      %p140 = scmp.eq.s32.totalorder %s14, 1
      %p141 = por %p139, %p140
      %p142 = scmp.ne.s32.totalorder %s134, %s137
      %p143 = scmp.eq.s32.totalorder %s14, 0
      %p144 = por %p142, %p143
      %p145 = scmp.ne.s32.totalorder %s134, %s137
      %p146 = scmp.eq.s32.totalorder %s19, 1
      %p147 = por %p145, %p146
      %p148 = scmp.ne.s32.totalorder %s137, %s138
      %p149 = scmp.eq.s32.totalorder %s19, 0
      %p150 = por %p148, %p149
      %p151 = scmp.ne.s32.totalorder %s137, %s138
      %p152 = scmp.eq.s32.totalorder %s20, 1
      %p153 = por %p151, %p152
      %p155 = scmp.ne.s32.totalorder %s138, %s154
      %p156 = scmp.eq.s32.totalorder %s20, 0
      %p157 = por %p155, %p156
      %p158 = scmp.le.s32.totalorder 1, %s14
      %p159 = scmp.lt.s32.totalorder %s14, 3
      %p160 = pnand %p158, %p159
      %p161 = pneg %p160
      // Predicated region
      $region9: #{fully_connected_forward.1} parent=5 // pred_check
        _
      $region10: #{fully_connected_forward.1} parent=5 // pred_check_branch
        %163 = sbr.rel (%p160) target = $region12
      $region11: #{fully_connected_forward.1} parent=5 // pred_region
        %s164 = ssub.s32 %s14, 1
        // Predicated region
        $region13: #{fully_connected_forward.1} parent=11 // pred_check
          %p165 = pneg %p61
        $region14: #{fully_connected_forward.1} parent=11 // pred_check_branch
          %167 = sbr.rel (%p165) target = $region16
        $region15: #{fully_connected_forward.1} parent=11 // pred_region
          _
        $region16: #{fully_connected_forward.1} parent=11 // pred_fallthru
          _
        // Predicated region
        $region17: #{fully_connected_forward.1} parent=11 // pred_check
          %p168 = pneg %p82
        $region18: #{fully_connected_forward.1} parent=11 // pred_check_branch
          %170 = sbr.rel (%p168) target = $region20
        $region19: #{fully_connected_forward.1} parent=11 // pred_region
          _
        $region20: #{fully_connected_forward.1} parent=11 // pred_fallthru
          _
        // Predicated region
        $region21: #{fully_connected_forward.1} parent=11 // pred_check
          %p171 = pneg %p103
        $region22: #{fully_connected_forward.1} parent=11 // pred_check_branch
          %173 = sbr.rel (%p171) target = $region24
        $region23: #{fully_connected_forward.1} parent=11 // pred_region
          _
        $region24: #{fully_connected_forward.1} parent=11 // pred_fallthru
          _
        // Predicated region
        $region25: #{fully_connected_forward.1} parent=11 // pred_check
          %p174 = pneg %p124
        $region26: #{fully_connected_forward.1} parent=11 // pred_check_branch
          %176 = sbr.rel (%p174) target = $region28
        $region27: #{fully_connected_forward.1} parent=11 // pred_region
          _
        $region28: #{fully_connected_forward.1} parent=11 // pred_fallthru
          _
      $region12: #{fully_connected_forward.1} parent=5 // pred_fallthru
        _
      %p177 = scmp.lt.s32.totalorder %s14, 2
      // Predicated region
      $region29: #{fully_connected_forward.1} parent=5 // pred_check
        %p178 = pneg %p177
      $region30: #{fully_connected_forward.1} parent=5 // pred_check_branch
        %180 = sbr.rel (%p178) target = $region32
      $region31: #{fully_connected_forward.1} parent=5 // pred_region
        // Predicated region
        $region33: #{fully_connected_forward.1} parent=31 // pred_check
          %p181 = pneg %p34
        $region34: #{fully_connected_forward.1} parent=31 // pred_check_branch
          %183 = sbr.rel (%p181) target = $region36
        $region35: #{fully_connected_forward.1} parent=31 // pred_region
          %s184 = smul.u32 32, %s14
          %s185 = ssub.s32 38, %s184
          %p186 = scmp.lt.s32.totalorder %s185, 32
          %s187 = scalar_select %p186, %s185, 32
          %s188 = smul.u32 64, %s187
          %p189 = scmp.lt.s32.totalorder %s184, 37
          %s190 = scalar_select %p189, %s184, 37
          %s191 = smul.addr %s190, 4
          %s192 = scalar_lea.vmem %s0, %s191
          %s193 = smul.u32 32, %s14
          %s194 = ssub.s32 38, %s193
          %p195 = scmp.lt.s32.totalorder %s194, 32
          %s196 = scalar_select %p195, %s194, 32
          %s197 = smul.u32 64, %s196
        $region36: #{fully_connected_forward.1} parent=31 // pred_fallthru
          _
      $region32: #{fully_connected_forward.1} parent=5 // pred_fallthru
        _
      %p198 = scmp.le.s32.totalorder 1, %s14
      %p199 = scmp.lt.s32.totalorder %s14, 3
      %p200 = pnand %p198, %p199
      %p201 = pneg %p200
      // Predicated region
      $region37: #{fully_connected_forward.1} parent=5 // pred_check
        _
      $region38: #{fully_connected_forward.1} parent=5 // pred_check_branch
        %203 = sbr.rel (%p200) target = $region40
      $region39: #{fully_connected_forward.1} parent=5 // pred_region
        %s204 = ssub.s32 %s14, 1
        %s205 = smul.u32 32, %s19
        %s206 = ssub.s32 38, %s205
        %p207 = scmp.lt.s32.totalorder %s206, 32
        %s208 = scalar_select %p207, %s206, 32
        %s209 = smul.u32 64, %s208
        %p210 = scmp.lt.s32.totalorder %s205, 37
        %s211 = scalar_select %p210, %s205, 37
        %s212 = smul.addr %s211, 4
        %s213 = scalar_lea.vmem %s0, %s212
        %p214 = pneg %p40
        %p215 = pneg %p37
        %p216 = pneg %p61
        %p217 = pneg %p58
        %p218 = pneg %p82
        %p219 = pneg %p79
        %p220 = pneg %p103
        %p221 = pneg %p100
        %p222 = pneg %p124
        %p223 = pneg %p121
        %p224 = pneg %p150
        %p225 = pneg %p147
        %s226 = sand.u32 %s137, 1
        %s227 = scalar_lea.sflag [#allocation3], %s226
        %s228 = sand.u32 %s137, 1
        %s229 = smul.addr %s228, 8
        %s230 = scalar_lea.vmem [#allocation2], %s229
        %s231 = smul.u32 32, %s19
        %s232 = ssub.s32 38, %s231
        %p233 = scmp.lt.s32.totalorder %s232, 32
        %s234 = scalar_select %p233, %s232, 32
        %s235 = smul.u32 64, %s234
        %p236 = scmp.lt.s32.totalorder %s231, 37
        %s237 = scalar_select %p236, %s231, 37
        %s238 = smul.addr %s237, 4
        %s239 = scalar_lea.vmem %s0, %s238
        %s240 = smul.u32 32, %s19
        %s241 = ssub.s32 38, %s240
        %p242 = scmp.lt.s32.totalorder %s241, 32
        %s243 = scalar_select %p242, %s241, 32
        %s244 = smul.u32 64, %s243
        %s245 = smul.u32 2, %s19
        %s246 = ssub.s32 3, %s245
        %p247 = scmp.lt.s32.totalorder %s246, 2
        %s248 = scalar_select %p247, %s246, 2
        %s249 = smul.u32 64, %s248
        %v251 = vld [vmem:[%s1] sm:$0x3]
        %v252 = vld [vmem:[%s239] sm:$0xf]
        %v253 = vld [vmem:[%s239 + $0x4] sm:$0xf]
        %v254 = vld [vmem:[%s239 + $0x8] sm:$0xf]
        %v255 = vld [vmem:[%s239 + $0xc] sm:$0xf]
        %v256 = vld [vmem:[%s239 + $0x10] sm:$0xf]
        %v257 = vld [vmem:[%s239 + $0x14] sm:$0xf]
        %v258 = vld [vmem:[%s239 + $0x18] sm:$0xf]
        %v259 = vld [vmem:[%s239 + $0x1c] sm:$0xf]
        %v260 = vld [vmem:[%s239 + $0x20] sm:$0xf]
        %v261 = vld [vmem:[%s239 + $0x24] sm:$0xf]
        %v262 = vld [vmem:[%s239 + $0x28] sm:$0xf]
        %v263 = vld [vmem:[%s239 + $0x2c] sm:$0xf]
        %v264 = vld [vmem:[%s239 + $0x30] sm:$0xf]
        %v265 = vld [vmem:[%s239 + $0x34] sm:$0xf]
        %v266 = vld [vmem:[%s239 + $0x38] sm:$0xf]
        %v267 = vld [vmem:[%s239 + $0x3c] sm:$0xf]
        %v268 = vld [vmem:[%s239 + $0x40] sm:$0xf]
        %v269 = vld [vmem:[%s239 + $0x44] sm:$0xf]
        %v270 = vld [vmem:[%s239 + $0x48] sm:$0xf]
        %v271 = vld [vmem:[%s239 + $0x4c] sm:$0xf]
        %v272 = vld [vmem:[%s239 + $0x50] sm:$0xf]
        %v273 = vld [vmem:[%s239 + $0x54] sm:$0xf]
        %v274 = vld [vmem:[%s239 + $0x58] sm:$0xf]
        %v275 = vld [vmem:[%s239 + $0x5c] sm:$0xf]
        %v276 = vld [vmem:[%s239 + $0x60] sm:$0xf]
        %v277 = vld [vmem:[%s239 + $0x64] sm:$0xf]
        %v278 = vld [vmem:[%s239 + $0x68] sm:$0xf]
        %v279 = vld [vmem:[%s239 + $0x6c] sm:$0xf]
        %v280 = vld [vmem:[%s239 + $0x70] sm:$0xf]
        %v281 = vld [vmem:[%s239 + $0x74] sm:$0xf]
        %v282 = vld [vmem:[%s239 + $0x78] sm:$0xf]
        %v283 = vld [vmem:[%s239 + $0x7c] sm:$0xf]
        %v284 = vld [vmem:[%s2] sm:$0xf]
        %286 = vset.pattern.permute.xlu0 0
        %287 = vperm.xlu0 %286, %v284
        %v288 = vpop.permute.xlu0 %287
        %v322 = vunpack.c.l.b16 %v252
        %v323 = vunpack.c.l.b16 %v253
        %v324 = vunpack.c.l.b16 %v254
        %v325 = vunpack.c.l.b16 %v255
        %v326 = vunpack.c.l.b16 %v256
        %v327 = vunpack.c.l.b16 %v257
        %v328 = vunpack.c.l.b16 %v258
        %v329 = vunpack.c.l.b16 %v259
        %v330 = vunpack.c.l.b16 %v260
        %v331 = vunpack.c.l.b16 %v261
        %v332 = vunpack.c.l.b16 %v262
        %v333 = vunpack.c.l.b16 %v263
        %v334 = vunpack.c.l.b16 %v264
        %v335 = vunpack.c.l.b16 %v265
        %v336 = vunpack.c.l.b16 %v266
        %v337 = vunpack.c.l.b16 %v267
        %v338 = vunpack.c.l.b16 %v268
        %v339 = vunpack.c.l.b16 %v269
        %v340 = vunpack.c.l.b16 %v270
        %v341 = vunpack.c.l.b16 %v271
        %v342 = vunpack.c.l.b16 %v272
        %v343 = vunpack.c.l.b16 %v273
        %v344 = vunpack.c.l.b16 %v274
        %v345 = vunpack.c.l.b16 %v275
        %v346 = vunpack.c.l.b16 %v276
        %v347 = vunpack.c.l.b16 %v277
        %v348 = vunpack.c.l.b16 %v278
        %v349 = vunpack.c.l.b16 %v279
        %v350 = vunpack.c.l.b16 %v280
        %v351 = vunpack.c.l.b16 %v281
        %v352 = vunpack.c.l.b16 %v282
        %v353 = vunpack.c.l.b16 %v283
        %v354 = vpack.c.b16 %v323, %v322
        %v355 = vpack.c.b16 %v325, %v324
        %v356 = vpack.c.b16 %v327, %v326
        %v357 = vpack.c.b16 %v329, %v328
        %v358 = vpack.c.b16 %v331, %v330
        %v359 = vpack.c.b16 %v333, %v332
        %v360 = vpack.c.b16 %v335, %v334
        %v361 = vpack.c.b16 %v337, %v336
        %v362 = vpack.c.b16 %v339, %v338
        %v363 = vpack.c.b16 %v341, %v340
        %v364 = vpack.c.b16 %v343, %v342
        %v365 = vpack.c.b16 %v345, %v344
        %v366 = vpack.c.b16 %v347, %v346
        %v367 = vpack.c.b16 %v349, %v348
        %v368 = vpack.c.b16 %v351, %v350
        %v369 = vpack.c.b16 %v353, %v352
        %vm370 = vcmask 15360
        %v372 = vsel %vm370, %v251, 0
        %v375 = vsel %vm370, %v354, 0
        %v378 = vsel %vm370, %v355, 0
        %v381 = vsel %vm370, %v356, 0
        %v384 = vsel %vm370, %v357, 0
        %v387 = vsel %vm370, %v358, 0
        %v390 = vsel %vm370, %v359, 0
        %v393 = vsel %vm370, %v360, 0
        %v396 = vsel %vm370, %v361, 0
        %v399 = vsel %vm370, %v362, 0
        %v402 = vsel %vm370, %v363, 0
        %v405 = vsel %vm370, %v364, 0
        %v408 = vsel %vm370, %v365, 0
        %v411 = vsel %vm370, %v366, 0
        %v414 = vsel %vm370, %v367, 0
        %v417 = vsel %vm370, %v368, 0
        %v420 = vsel %vm370, %v369, 0
        %422 = vmatprep.subr.bf16.mxu0 0
        %423 = vmatpush1.bf16.xpose.msra.mxu0 %v375
        %424 = vmatprep.subr.bf16.mxu0 0
        %425 = vmatpush1.bf16.xpose.msra.mxu0 %v378
        %426 = vmatprep.subr.bf16.mxu0 0
        %427 = vmatpush1.bf16.xpose.msra.mxu0 %v381
        %428 = vmatprep.subr.bf16.mxu0 0
        %429 = vmatpush1.bf16.xpose.msra.mxu0 %v384
        %430 = vmatprep.subr.bf16.mxu0 0
        %431 = vmatpush1.bf16.xpose.msra.mxu0 %v387
        %432 = vmatprep.subr.bf16.mxu0 0
        %433 = vmatpush1.bf16.xpose.msra.mxu0 %v390
        %434 = vmatprep.subr.bf16.mxu0 0
        %435 = vmatpush1.bf16.xpose.msra.mxu0 %v393
        %436 = vmatprep.subr.bf16.mxu0 0
        %437 = vmatpush1.bf16.xpose.msra.mxu0 %v396
        %438 = vmatprep.subr.bf16.mxu0 0
        %439 = vmatpush1.bf16.xpose.msra.mxu0 %v399
        %440 = vmatprep.subr.bf16.mxu0 0
        %441 = vmatpush1.bf16.xpose.msra.mxu0 %v402
        %442 = vmatprep.subr.bf16.mxu0 0
        %443 = vmatpush1.bf16.xpose.msra.mxu0 %v405
        %444 = vmatprep.subr.bf16.mxu0 0
        %445 = vmatpush1.bf16.xpose.msra.mxu0 %v408
        %446 = vmatprep.subr.bf16.mxu0 0
        %447 = vmatpush1.bf16.xpose.msra.mxu0 %v411
        %448 = vmatprep.subr.bf16.mxu0 0
        %449 = vmatpush1.bf16.xpose.msra.mxu0 %v414
        %450 = vmatprep.subr.bf16.mxu0 0
        %451 = vmatpush1.bf16.xpose.msra.mxu0 %v417
        %452 = vmatprep.subr.bf16.mxu0 0
        %453 = vmatpush1.bf16.xpose.msra.mxu0 %v420
        %454 = vmatprep.mubr.bf16.mxu0 0
        %455 = vmatmul.mubr.bf16.gmra.mrb[0].mxu0 %v372
        %v456 = vpop.f32.mrb[0].mxu0
        %v457 = vadd.f32 %v288, %v456
        %v458 = vpop.f32.mrb[0].mxu0
        %v459 = vadd.f32 %v288, %v458
        %v460 = vpop.f32.mrb[0].mxu0
        %v461 = vpop.f32.mrb[0].mxu0
        %462 = vdwg.mxu0
        %v463 = vmax.f32 %v457, 0.0
        %v464 = vmax.f32 %v459, 0.0
        %v465 = vld [vmem:[%s3] sm:$0x3]
        %v466 = vpack.c.bf16 %v463, %v463
        %v467 = vpack.c.bf16 %v464, %v464
        %v468 = vld [vmem:[%s4] sm:$0x7]
        %470 = vset.pattern.permute.xlu0 0
        %471 = vperm.xlu0 %470, %v468
        %v472 = vpop.permute.xlu0 %471
        %vm474 = vcmask 31744
        %v476 = vsel %vm474, %v465, 0
        %vm478 = vcmask 1041408
        %v480 = vsel %vm478, %v466, 0
        %v483 = vsel %vm478, %v467, 0
        %485 = vmatprep.subr.bf16.mxu0 %v483
        %486 = vmatpush1.bf16.msra.mxu0 %v480
        %487 = vmatprep.subr.bf16.mxu0 0
        %488 = vmatpush1.bf16.msra.mxu0 0
        %489 = vmatprep.subr.bf16.mxu0 0
        %490 = vmatpush1.bf16.msra.mxu0 0
        %491 = vmatprep.subr.bf16.mxu0 0
        %492 = vmatpush1.bf16.msra.mxu0 0
        %493 = vmatprep.subr.bf16.mxu0 0
        %494 = vmatpush1.bf16.msra.mxu0 0
        %495 = vmatprep.subr.bf16.mxu0 0
        %496 = vmatpush1.bf16.msra.mxu0 0
        %497 = vmatprep.subr.bf16.mxu0 0
        %498 = vmatpush1.bf16.msra.mxu0 0
        %499 = vmatprep.subr.bf16.mxu0 0
        %500 = vmatpush1.bf16.msra.mxu0 0
        %501 = vmatprep.subr.bf16.mxu0 0
        %502 = vmatpush1.bf16.msra.mxu0 0
        %503 = vmatprep.subr.bf16.mxu0 0
        %504 = vmatpush1.bf16.msra.mxu0 0
        %505 = vmatprep.subr.bf16.mxu0 0
        %506 = vmatpush1.bf16.msra.mxu0 0
        %507 = vmatprep.subr.bf16.mxu0 0
        %508 = vmatpush1.bf16.msra.mxu0 0
        %509 = vmatprep.subr.bf16.mxu0 0
        %510 = vmatpush1.bf16.msra.mxu0 0
        %511 = vmatprep.subr.bf16.mxu0 0
        %512 = vmatpush1.bf16.msra.mxu0 0
        %513 = vmatprep.subr.bf16.mxu0 0
        %514 = vmatpush1.bf16.msra.mxu0 0
        %515 = vmatprep.subr.bf16.mxu0 0
        %516 = vmatpush1.bf16.msra.mxu0 0
        %517 = vmatprep.mubr.bf16.mxu0 0
        %518 = vmatmul.mubr.bf16.gmra.mrb[0].mxu0 %v476
        %v519 = vpop.f32.mrb[0].mxu0
        %v520 = vadd.f32 %v472, %v519
        %v521 = vpop.f32.mrb[0].mxu0
        %v522 = vadd.f32 %v472, %v521
        %v523 = vpop.f32.mrb[0].mxu0
        %v524 = vpop.f32.mrb[0].mxu0
        %525 = vdwg.mxu0
        %v528 = vcombine.low %v520, %v522
        %530 = vst [vmem:[%s230] sm:$0x77] %v528
        %s531 = sand.u32 %s137, 1
        %s532 = scalar_lea.sflag [#allocation3], %s531
        %s533 = sand.u32 %s137, 1
        %s534 = smul.addr %s533, 8
        %s535 = scalar_lea.vmem [#allocation2], %s534
        // Predicated region
        $region41: #{fully_connected_forward.1} parent=39 // pred_check
          %p536 = pneg %p147
        $region42: #{fully_connected_forward.1} parent=39 // pred_check_branch
          %538 = sbr.rel (%p536) target = $region44
        $region43: #{fully_connected_forward.1} parent=39 // pred_region
          %s539 = smul.u32 2, %s19
          %s540 = ssub.s32 3, %s539
          %p541 = scmp.lt.s32.totalorder %s540, 2
          %s542 = scalar_select %p541, %s540, 2
          %s543 = smul.u32 64, %s542
          %s545 = ssub.s32 128, %s543
          %546 = vsyncadd %s532, %s545
          %p547 = scmp.ne.s32.totalorder 0, %s543
          %s548 = smul.addr %s539, 64
          %s549 = scalar_lea.hbm %s5, %s548
          %s550 = smul.u32 %s542, 4
          %s551 = sshll.u32 %s550, 4
          %s552 = sshll.u32 %s535, 4
          %s553 = int_to_ptr.vmem [resolvable:$true] %s552
          %555 = dma.vmem_to_hbm [thread:$0]  (%p547), %s553, %s551, %s549, %s532
        $region44: #{fully_connected_forward.1} parent=39 // pred_fallthru
          _
      $region40: #{fully_connected_forward.1} parent=5 // pred_fallthru
        _
      %p556 = scmp.le.s32.totalorder 2, %s14
      // Predicated region
      $region45: #{fully_connected_forward.1} parent=5 // pred_check
        %p557 = pneg %p556
      $region46: #{fully_connected_forward.1} parent=5 // pred_check_branch
        %559 = sbr.rel (%p557) target = $region48
      $region47: #{fully_connected_forward.1} parent=5 // pred_region
        %s560 = ssub.s32 %s14, 2
        // Predicated region
        $region49: #{fully_connected_forward.1} parent=47 // pred_check
          %p561 = pneg %p153
        $region50: #{fully_connected_forward.1} parent=47 // pred_check_branch
          %563 = sbr.rel (%p561) target = $region52
        $region51: #{fully_connected_forward.1} parent=47 // pred_region
          %s564 = sand.u32 %s138, 1
          %s565 = scalar_lea.sflag [#allocation3], %s564
          %s566 = sand.u32 %s138, 1
          %s567 = smul.addr %s566, 8
          %s568 = scalar_lea.vmem [#allocation2], %s567
          %569 = dma.done %s565, 128
        $region52: #{fully_connected_forward.1} parent=47 // pred_fallthru
          _
      $region48: #{fully_connected_forward.1} parent=5 // pred_fallthru
        _
    $region6: #{fully_connected_forward.1} parent=1 // loop_footer
      %s18 = sadd.s32 1, %s14
    $region7: #{fully_connected_forward.1} parent=1 // loop_footer_branch
      %13 = sbr.rel target = $region3
    $region8: #{fully_connected_forward.1} parent=1 // loop_exit
      _
    %570 = vsyncpa [#allocation3], 1
    %s571 = scalar_lea.sflag [#allocation3], 1
    %572 = vsyncpa %s571, 1

</llo_original>
